<compile_context>
chip_gen: v6e
topology: v6e:2x2x1
jax: 0.10.0
libtpu: 0.0.40
codegen_flags: <defaults>
</compile_context>

<pallas_src>
import functools

import numpy as np

import jax
import jax.numpy as jnp
from jax.experimental import pallas as pl
from jax.experimental.pallas import tpu as pltpu


def _round_up(v, m):
    return (v + m - 1) // m * m


# ----------------------------------------------------------------------------- kernel
def _sample_fused_kernel(x_ref, w1_ref, w2_ref, m_ref, out_ref, *, H, W, activation):
    """One grid step = one batch sample; both conv+InstanceNorm stages fused.

    x_ref  : (1, Cp, H*W)   input, channels zero-padded to Cp (multiple of 8)
    w1_ref : (Cp, 9*Cp)     conv1 weights, index [cout, (ky*3+kx)*Cp + cin]
    w2_ref : (Cfin, 9*Cp)   conv2 weights
    m_ref  : (9, 1, H*W)    0/1 border masks per 3x3 tap (emulate zero padding)
    out_ref: (1, Cfin, H*W)
    """
    HW = H * W
    x = x_ref[0].astype(jnp.float32)                       # (Cp, HW)

    # Leading activation (applied to the raw input, exactly as nn.Sequential
    # does; the zero "padding" is applied afterwards via the masks).
    if activation == "leaky_relu":
        x = jnp.where(x >= 0, x, jnp.float32(0.01) * x)
    elif activation == "relu":
        x = jnp.maximum(x, jnp.float32(0.0))
    elif activation == "tanh":
        x = jnp.tanh(x)

    masks = [m_ref[k] for k in range(9)]                   # each (1, HW)

    def conv3x3_instnorm(h, wt):
        # h: (Cp, HW)   wt: (Cout, 9*Cp)  ->  instance-normalized (Cout, HW)
        parts = []
        k = 0
        for dy in (-1, 0, 1):
            for dx in (-1, 0, 1):
                s = dy * W + dx                            # flat neighbour offset
                if s == 0:
                    shifted = h                            # centre tap, mask == 1
                else:
                    # shifted[:, p] = h[:, (p + s) mod HW]  (XLU rotate)
                    shifted = pltpu.roll(h, (-s) % HW, axis=1)
                    shifted = shifted * masks[k]           # zero the wrapped taps
                parts.append(shifted)
                k += 1
        patches = jnp.concatenate(parts, axis=0)           # (9*Cp, HW), tile-aligned
        y = jnp.dot(wt, patches, preferred_element_type=jnp.float32)  # (Cout, HW)

        # InstanceNorm2d (affine=False, eps=1e-5, biased variance), single pass.
        inv_hw = jnp.float32(1.0 / HW)
        mean = jnp.sum(y, axis=1, keepdims=True) * inv_hw
        ex2 = jnp.sum(y * y, axis=1, keepdims=True) * inv_hw
        var = ex2 - mean * mean
        return (y - mean) * jax.lax.rsqrt(var + jnp.float32(1e-5))

    h1 = conv3x3_instnorm(x, w1_ref[...].astype(jnp.float32))   # stays in VMEM
    h2 = conv3x3_instnorm(h1, w2_ref[...].astype(jnp.float32))
    out_ref[0] = h2.astype(out_ref.dtype)


# ----------------------------------------------------------------------------- helpers
def _border_masks(H, W):
    """(9, 1, H*W) float32 masks; mask[k]=0 where the k-th 3x3 tap falls in the pad."""
    yy, xx = np.meshgrid(np.arange(H), np.arange(W), indexing="ij")
    out = []
    for dy in (-1, 0, 1):
        for dx in (-1, 0, 1):
            ok = (yy + dy >= 0) & (yy + dy < H) & (xx + dx >= 0) & (xx + dx < W)
            out.append(ok.astype(np.float32).reshape(1, H * W))
    return jnp.asarray(np.stack(out, axis=0))              # (9, 1, H*W)


def _pack_weights(w_hwio, cin_pad, cout_pad=None):
    """(3,3,Cin,Cout) HWIO -> (Cout_p, 9*Cin_p): zero-pad channels, flatten, transpose."""
    kh, kw, cin, cout = w_hwio.shape
    pad_out = (cout_pad - cout) if cout_pad is not None else 0
    w = jnp.pad(w_hwio, ((0, 0), (0, 0), (0, cin_pad - cin), (0, pad_out)))
    cout_p = cout + pad_out
    return w.reshape(kh * kw * cin_pad, cout_p).T          # (Cout_p, 9*Cin_p)


# ----------------------------------------------------------------------------- wrapper
@functools.partial(jax.jit, static_argnames=("activation",))
def sample_forward(x_nchw, w1_hwio, w2_hwio, *, activation):
    B, Cin, H, W = x_nchw.shape
    HW = H * W
    Cmid = w1_hwio.shape[-1]
    Cfin = w2_hwio.shape[-1]
    Cp = max(_round_up(Cin, 8), _round_up(Cmid, 8))        # padded channel width

    # NCHW -> (B, Cp, H*W): reshape + channel pad only, no transposes.
    x = x_nchw.astype(jnp.float32).reshape(B, Cin, HW)
    x = jnp.pad(x, ((0, 0), (0, Cp - Cin), (0, 0)))

    w1t = _pack_weights(w1_hwio, Cp, Cp)                   # (Cp,   9*Cp)
    w2t = _pack_weights(w2_hwio, Cp, None)                 # (Cfin, 9*Cp)
    masks = _border_masks(H, W)                            # (9, 1, HW) constants

    kernel = functools.partial(_sample_fused_kernel, H=H, W=W, activation=activation)

    out = pl.pallas_call(
        kernel,
        out_shape=jax.ShapeDtypeStruct((B, Cfin, HW), jnp.float32),
        grid_spec=pltpu.PrefetchScalarGridSpec(
            num_scalar_prefetch=0,
            grid=(B,),
            in_specs=[
                pl.BlockSpec((1, Cp, HW), lambda n: (n, 0, 0)),      # x (lane-dense)
                pl.BlockSpec((Cp, 9 * Cp), lambda n: (0, 0)),        # w1
                pl.BlockSpec((Cfin, 9 * Cp), lambda n: (0, 0)),      # w2
                pl.BlockSpec((9, 1, HW), lambda n: (0, 0, 0)),       # border masks
            ],
            out_specs=pl.BlockSpec((1, Cfin, HW), lambda n: (n, 0, 0)),
        ),
        compiler_params=pltpu.CompilerParams(
            dimension_semantics=("parallel",)),             # B>=2 -> both v7x TCs busy
    )(x, w1t, w2t, masks)

    return out.reshape(B, Cfin, H, W)                       # already NCHW


# ----------------------------------------------------------------------------- module
class SamplePallas:
    """Pallas port of `Sample` (kernel_size=3, stride=1, padding=1)."""

    def __init__(self, in_channels=4, out_channels=4, kernel_size=3, stride=1,
                 padding=1, mode="down", init_layer=False, key=jax.random.PRNGKey(0)):
        assert kernel_size == 3 and stride == 1 and padding == 1
        if mode == "down":
            self.activation = "leaky_relu"
            final_channels = out_channels
        elif mode == "up":
            self.activation = "relu"
            final_channels = out_channels
        elif mode == "out":
            self.activation = "tanh"
            final_channels = 3
        else:
            raise NotImplementedError()
        if init_layer:
            in_channels = 3

        k1, k2, k3, k4 = jax.random.split(key, 4)

        def _init_conv(kw, kb, cin, cout):
            fan_in = cin * 9
            bound = 1.0 / float(np.sqrt(fan_in))
            w = jax.random.uniform(kw, (3, 3, cin, cout), jnp.float32, -bound, bound)
            b = jax.random.uniform(kb, (cout,), jnp.float32, -bound, bound)
            return w, b

        self.w1, self.b1 = _init_conv(k1, k2, in_channels, out_channels)
        self.w2, self.b2 = _init_conv(k3, k4, out_channels, final_channels)
        # NOTE: b1/b2 exist for parameter parity but are NOT fed to the kernel:
        # InstanceNorm2d(affine=False) subtracts the per-channel mean right after
        # each conv, so a per-channel bias cancels exactly (numerically dead).

    def __call__(self, x_nchw):
        return sample_forward(x_nchw, self.w1, self.w2, activation=self.activation)


# ----------------------------------------------------------------------------- main
if __name__ == "__main__":
    key = jax.random.PRNGKey(0)
    kx, kp = jax.random.split(key)

    B, C, Hs, Ws = 2, 4, 16, 16
    x = jax.random.normal(kx, (B, C, Hs, Ws), jnp.float32)

    model = SamplePallas(in_channels=C, out_channels=C, mode="down", key=kp)
    out = model(x)
    out = jax.block_until_ready(out)

    assert out.shape == (B, C, Hs, Ws), out.shape
    assert bool(jnp.all(jnp.isfinite(out)))
    print("KERNEL_OK")
</pallas_src>

<mosaic_0001>
module attributes {stable_mosaic.version = 11 : i64} {
  func.func @_sample_fused_kernel(%arg0: i32, %arg1: memref<1x8x256xf32, #tpu.memory_space<vmem>>, %arg2: memref<8x72xf32, #tpu.memory_space<vmem>>, %arg3: memref<4x72xf32, #tpu.memory_space<vmem>>, %arg4: memref<9x1x256xf32, #tpu.memory_space<vmem>>, %arg5: memref<1x4x256xf32, #tpu.memory_space<vmem>>) attributes {dimension_semantics = [#tpu.dimension_semantics<parallel>], iteration_bounds = array<i64: 2>, scalar_prefetch = 0 : i64, scratch_operands = 0 : i64, tpu.core_type = #tpu.core_type<tc>, window_params = [{transform_indices = @transform_0, window_bounds = array<i64: 1, 8, 256>}, {pipeline_mode = #tpu.pipeline_mode<synchronous>, transform_indices = @transform_1, window_bounds = array<i64: 8, 72>}, {pipeline_mode = #tpu.pipeline_mode<synchronous>, transform_indices = @transform_2, window_bounds = array<i64: 4, 72>}, {pipeline_mode = #tpu.pipeline_mode<synchronous>, transform_indices = @transform_3, window_bounds = array<i64: 9, 1, 256>}, {transform_indices = @transform_4, window_bounds = array<i64: 1, 4, 256>}]} {
    %c0 = arith.constant 0 : index
    %c0_0 = arith.constant 0 : index
    %c0_1 = arith.constant 0 : index
    %0 = vector.load %arg1[%c0, %c0_0, %c0_1] : memref<1x8x256xf32, #tpu.memory_space<vmem>>, vector<1x8x256xf32>
    %1 = vector.shape_cast %0 : vector<1x8x256xf32> to vector<8x256xf32>
    %cst = arith.constant 0.000000e+00 : f32
    %2 = vector.broadcast %cst : f32 to vector<8x256xf32>
    %3 = arith.cmpf oge, %1, %2 : vector<8x256xf32>
    %cst_2 = arith.constant 0.00999999977 : f32
    %4 = vector.broadcast %cst_2 : f32 to vector<8x256xf32>
    %5 = arith.mulf %4, %1 : vector<8x256xf32>
    %6 = arith.select %3, %1, %5 : vector<8x256xi1>, vector<8x256xf32>
    %c0_3 = arith.constant 0 : index
    %c0_4 = arith.constant 0 : index
    %c0_5 = arith.constant 0 : index
    %7 = vector.load %arg4[%c0_3, %c0_4, %c0_5] : memref<9x1x256xf32, #tpu.memory_space<vmem>>, vector<1x1x256xf32>
    %8 = vector.shape_cast %7 : vector<1x1x256xf32> to vector<1x256xf32>
    %c1 = arith.constant 1 : index
    %c0_6 = arith.constant 0 : index
    %c0_7 = arith.constant 0 : index
    %9 = vector.load %arg4[%c1, %c0_6, %c0_7] : memref<9x1x256xf32, #tpu.memory_space<vmem>>, vector<1x1x256xf32>
    %10 = vector.shape_cast %9 : vector<1x1x256xf32> to vector<1x256xf32>
    %c2 = arith.constant 2 : index
    %c0_8 = arith.constant 0 : index
    %c0_9 = arith.constant 0 : index
    %11 = vector.load %arg4[%c2, %c0_8, %c0_9] : memref<9x1x256xf32, #tpu.memory_space<vmem>>, vector<1x1x256xf32>
    %12 = vector.shape_cast %11 : vector<1x1x256xf32> to vector<1x256xf32>
    %c3 = arith.constant 3 : index
    %c0_10 = arith.constant 0 : index
    %c0_11 = arith.constant 0 : index
    %13 = vector.load %arg4[%c3, %c0_10, %c0_11] : memref<9x1x256xf32, #tpu.memory_space<vmem>>, vector<1x1x256xf32>
    %14 = vector.shape_cast %13 : vector<1x1x256xf32> to vector<1x256xf32>
    %c5 = arith.constant 5 : index
    %c0_12 = arith.constant 0 : index
    %c0_13 = arith.constant 0 : index
    %15 = vector.load %arg4[%c5, %c0_12, %c0_13] : memref<9x1x256xf32, #tpu.memory_space<vmem>>, vector<1x1x256xf32>
    %16 = vector.shape_cast %15 : vector<1x1x256xf32> to vector<1x256xf32>
    %c6 = arith.constant 6 : index
    %c0_14 = arith.constant 0 : index
    %c0_15 = arith.constant 0 : index
    %17 = vector.load %arg4[%c6, %c0_14, %c0_15] : memref<9x1x256xf32, #tpu.memory_space<vmem>>, vector<1x1x256xf32>
    %18 = vector.shape_cast %17 : vector<1x1x256xf32> to vector<1x256xf32>
    %c7 = arith.constant 7 : index
    %c0_16 = arith.constant 0 : index
    %c0_17 = arith.constant 0 : index
    %19 = vector.load %arg4[%c7, %c0_16, %c0_17] : memref<9x1x256xf32, #tpu.memory_space<vmem>>, vector<1x1x256xf32>
    %20 = vector.shape_cast %19 : vector<1x1x256xf32> to vector<1x256xf32>
    %c8 = arith.constant 8 : index
    %c0_18 = arith.constant 0 : index
    %c0_19 = arith.constant 0 : index
    %21 = vector.load %arg4[%c8, %c0_18, %c0_19] : memref<9x1x256xf32, #tpu.memory_space<vmem>>, vector<1x1x256xf32>
    %22 = vector.shape_cast %21 : vector<1x1x256xf32> to vector<1x256xf32>
    %c0_20 = arith.constant 0 : index
    %c0_21 = arith.constant 0 : index
    %23 = vector.load %arg2[%c0_20, %c0_21] : memref<8x72xf32, #tpu.memory_space<vmem>>, vector<8x72xf32>
    %c17_i32 = arith.constant 17 : i32
    %24 = tpu.dynamic_rotate %6 by %c17_i32 dim 1 : vector<8x256xf32>, i32 -> vector<8x256xf32>
    %25 = vector.broadcast %8 : vector<1x256xf32> to vector<8x256xf32>
    %26 = arith.mulf %24, %25 : vector<8x256xf32>
    %c16_i32 = arith.constant 16 : i32
    %27 = tpu.dynamic_rotate %6 by %c16_i32 dim 1 : vector<8x256xf32>, i32 -> vector<8x256xf32>
    %28 = vector.broadcast %10 : vector<1x256xf32> to vector<8x256xf32>
    %29 = arith.mulf %27, %28 : vector<8x256xf32>
    %c15_i32 = arith.constant 15 : i32
    %30 = tpu.dynamic_rotate %6 by %c15_i32 dim 1 : vector<8x256xf32>, i32 -> vector<8x256xf32>
    %31 = vector.broadcast %12 : vector<1x256xf32> to vector<8x256xf32>
    %32 = arith.mulf %30, %31 : vector<8x256xf32>
    %c1_i32 = arith.constant 1 : i32
    %33 = tpu.dynamic_rotate %6 by %c1_i32 dim 1 : vector<8x256xf32>, i32 -> vector<8x256xf32>
    %34 = vector.broadcast %14 : vector<1x256xf32> to vector<8x256xf32>
    %35 = arith.mulf %33, %34 : vector<8x256xf32>
    %c255_i32 = arith.constant 255 : i32
    %36 = tpu.dynamic_rotate %6 by %c255_i32 dim 1 : vector<8x256xf32>, i32 -> vector<8x256xf32>
    %37 = vector.broadcast %16 : vector<1x256xf32> to vector<8x256xf32>
    %38 = arith.mulf %36, %37 : vector<8x256xf32>
    %c241_i32 = arith.constant 241 : i32
    %39 = tpu.dynamic_rotate %6 by %c241_i32 dim 1 : vector<8x256xf32>, i32 -> vector<8x256xf32>
    %40 = vector.broadcast %18 : vector<1x256xf32> to vector<8x256xf32>
    %41 = arith.mulf %39, %40 : vector<8x256xf32>
    %c240_i32 = arith.constant 240 : i32
    %42 = tpu.dynamic_rotate %6 by %c240_i32 dim 1 : vector<8x256xf32>, i32 -> vector<8x256xf32>
    %43 = vector.broadcast %20 : vector<1x256xf32> to vector<8x256xf32>
    %44 = arith.mulf %42, %43 : vector<8x256xf32>
    %c239_i32 = arith.constant 239 : i32
    %45 = tpu.dynamic_rotate %6 by %c239_i32 dim 1 : vector<8x256xf32>, i32 -> vector<8x256xf32>
    %46 = vector.broadcast %22 : vector<1x256xf32> to vector<8x256xf32>
    %47 = arith.mulf %45, %46 : vector<8x256xf32>
    %48 = tpu.concatenate %26, %29, %32, %35, %6, %38, %41, %44, %47 in 0 : vector<8x256xf32>, vector<8x256xf32>, vector<8x256xf32>, vector<8x256xf32>, vector<8x256xf32>, vector<8x256xf32>, vector<8x256xf32>, vector<8x256xf32>, vector<8x256xf32> -> vector<72x256xf32>
    %cst_22 = arith.constant dense<0.000000e+00> : vector<8x256xf32>
    %49 = tpu.matmul %23, %48, %cst_22 {dimension_numbers = #tpu.dot_dimension_numbers<[1], [0], [0], [1], [0, 0, 1, 1], [], []>} : vector<8x72xf32>, vector<72x256xf32>, vector<8x256xf32> -> vector<8x256xf32>
    %cst_23 = arith.constant dense<0.000000e+00> : vector<8xf32>
    %50 = vector.multi_reduction <add>, %49, %cst_23 [1] : vector<8x256xf32> to vector<8xf32>
    %51 = vector.shape_cast %50 : vector<8xf32> to vector<8x1xf32>
    %cst_24 = arith.constant 3.906250e-03 : f32
    %52 = vector.broadcast %cst_24 : f32 to vector<8x1xf32>
    %53 = arith.mulf %51, %52 : vector<8x1xf32>
    %54 = arith.mulf %49, %49 : vector<8x256xf32>
    %cst_25 = arith.constant dense<0.000000e+00> : vector<8xf32>
    %55 = vector.multi_reduction <add>, %54, %cst_25 [1] : vector<8x256xf32> to vector<8xf32>
    %56 = vector.shape_cast %55 : vector<8xf32> to vector<8x1xf32>
    %cst_26 = arith.constant 3.906250e-03 : f32
    %57 = vector.broadcast %cst_26 : f32 to vector<8x1xf32>
    %58 = arith.mulf %56, %57 : vector<8x1xf32>
    %59 = arith.mulf %53, %53 : vector<8x1xf32>
    %60 = arith.subf %58, %59 : vector<8x1xf32>
    %61 = vector.broadcast %53 : vector<8x1xf32> to vector<8x256xf32>
    %62 = arith.subf %49, %61 : vector<8x256xf32>
    %cst_27 = arith.constant 9.99999974E-6 : f32
    %63 = vector.broadcast %cst_27 : f32 to vector<8x1xf32>
    %64 = arith.addf %60, %63 : vector<8x1xf32>
    %65 = math.rsqrt %64 : vector<8x1xf32>
    %66 = vector.broadcast %65 : vector<8x1xf32> to vector<8x256xf32>
    %67 = arith.mulf %62, %66 : vector<8x256xf32>
    %c0_28 = arith.constant 0 : index
    %c0_29 = arith.constant 0 : index
    %68 = vector.load %arg3[%c0_28, %c0_29] : memref<4x72xf32, #tpu.memory_space<vmem>>, vector<4x72xf32>
    %c17_i32_30 = arith.constant 17 : i32
    %69 = tpu.dynamic_rotate %67 by %c17_i32_30 dim 1 : vector<8x256xf32>, i32 -> vector<8x256xf32>
    %70 = vector.broadcast %8 : vector<1x256xf32> to vector<8x256xf32>
    %71 = arith.mulf %69, %70 : vector<8x256xf32>
    %c16_i32_31 = arith.constant 16 : i32
    %72 = tpu.dynamic_rotate %67 by %c16_i32_31 dim 1 : vector<8x256xf32>, i32 -> vector<8x256xf32>
    %73 = vector.broadcast %10 : vector<1x256xf32> to vector<8x256xf32>
    %74 = arith.mulf %72, %73 : vector<8x256xf32>
    %c15_i32_32 = arith.constant 15 : i32
    %75 = tpu.dynamic_rotate %67 by %c15_i32_32 dim 1 : vector<8x256xf32>, i32 -> vector<8x256xf32>
    %76 = vector.broadcast %12 : vector<1x256xf32> to vector<8x256xf32>
    %77 = arith.mulf %75, %76 : vector<8x256xf32>
    %c1_i32_33 = arith.constant 1 : i32
    %78 = tpu.dynamic_rotate %67 by %c1_i32_33 dim 1 : vector<8x256xf32>, i32 -> vector<8x256xf32>
    %79 = vector.broadcast %14 : vector<1x256xf32> to vector<8x256xf32>
    %80 = arith.mulf %78, %79 : vector<8x256xf32>
    %c255_i32_34 = arith.constant 255 : i32
    %81 = tpu.dynamic_rotate %67 by %c255_i32_34 dim 1 : vector<8x256xf32>, i32 -> vector<8x256xf32>
    %82 = vector.broadcast %16 : vector<1x256xf32> to vector<8x256xf32>
    %83 = arith.mulf %81, %82 : vector<8x256xf32>
    %c241_i32_35 = arith.constant 241 : i32
    %84 = tpu.dynamic_rotate %67 by %c241_i32_35 dim 1 : vector<8x256xf32>, i32 -> vector<8x256xf32>
    %85 = vector.broadcast %18 : vector<1x256xf32> to vector<8x256xf32>
    %86 = arith.mulf %84, %85 : vector<8x256xf32>
    %c240_i32_36 = arith.constant 240 : i32
    %87 = tpu.dynamic_rotate %67 by %c240_i32_36 dim 1 : vector<8x256xf32>, i32 -> vector<8x256xf32>
    %88 = vector.broadcast %20 : vector<1x256xf32> to vector<8x256xf32>
    %89 = arith.mulf %87, %88 : vector<8x256xf32>
    %c239_i32_37 = arith.constant 239 : i32
    %90 = tpu.dynamic_rotate %67 by %c239_i32_37 dim 1 : vector<8x256xf32>, i32 -> vector<8x256xf32>
    %91 = vector.broadcast %22 : vector<1x256xf32> to vector<8x256xf32>
    %92 = arith.mulf %90, %91 : vector<8x256xf32>
    %93 = tpu.concatenate %71, %74, %77, %80, %67, %83, %86, %89, %92 in 0 : vector<8x256xf32>, vector<8x256xf32>, vector<8x256xf32>, vector<8x256xf32>, vector<8x256xf32>, vector<8x256xf32>, vector<8x256xf32>, vector<8x256xf32>, vector<8x256xf32> -> vector<72x256xf32>
    %cst_38 = arith.constant dense<0.000000e+00> : vector<4x256xf32>
    %94 = tpu.matmul %68, %93, %cst_38 {dimension_numbers = #tpu.dot_dimension_numbers<[1], [0], [0], [1], [0, 0, 1, 1], [], []>} : vector<4x72xf32>, vector<72x256xf32>, vector<4x256xf32> -> vector<4x256xf32>
    %cst_39 = arith.constant dense<0.000000e+00> : vector<4xf32>
    %95 = vector.multi_reduction <add>, %94, %cst_39 [1] : vector<4x256xf32> to vector<4xf32>
    %96 = vector.shape_cast %95 : vector<4xf32> to vector<4x1xf32>
    %cst_40 = arith.constant 3.906250e-03 : f32
    %97 = vector.broadcast %cst_40 : f32 to vector<4x1xf32>
    %98 = arith.mulf %96, %97 : vector<4x1xf32>
    %99 = arith.mulf %94, %94 : vector<4x256xf32>
    %cst_41 = arith.constant dense<0.000000e+00> : vector<4xf32>
    %100 = vector.multi_reduction <add>, %99, %cst_41 [1] : vector<4x256xf32> to vector<4xf32>
    %101 = vector.shape_cast %100 : vector<4xf32> to vector<4x1xf32>
    %cst_42 = arith.constant 3.906250e-03 : f32
    %102 = vector.broadcast %cst_42 : f32 to vector<4x1xf32>
    %103 = arith.mulf %101, %102 : vector<4x1xf32>
    %104 = arith.mulf %98, %98 : vector<4x1xf32>
    %105 = arith.subf %103, %104 : vector<4x1xf32>
    %106 = vector.broadcast %98 : vector<4x1xf32> to vector<4x256xf32>
    %107 = arith.subf %94, %106 : vector<4x256xf32>
    %cst_43 = arith.constant 9.99999974E-6 : f32
    %108 = vector.broadcast %cst_43 : f32 to vector<4x1xf32>
    %109 = arith.addf %105, %108 : vector<4x1xf32>
    %110 = math.rsqrt %109 : vector<4x1xf32>
    %111 = vector.broadcast %110 : vector<4x1xf32> to vector<4x256xf32>
    %112 = arith.mulf %107, %111 : vector<4x256xf32>
    %c0_44 = arith.constant 0 : index
    %c0_45 = arith.constant 0 : index
    %c0_46 = arith.constant 0 : index
    %113 = vector.load %arg5[%c0_44, %c0_45, %c0_46] : memref<1x4x256xf32, #tpu.memory_space<vmem>>, vector<1x4x256xf32>
    %114 = vector.shape_cast %113 : vector<1x4x256xf32> to vector<4x256xf32>
    %115 = vector.shape_cast %112 : vector<4x256xf32> to vector<1x4x256xf32>
    tpu.vector_store %arg5[%c0_44, %c0_45, %c0_46], %115 {strides = array<i32>} : memref<1x4x256xf32, #tpu.memory_space<vmem>>, vector<1x4x256xf32>,
    return
  }
  func.func @transform_0(%arg0: i32) -> (i32, i32, i32) {
    %c0_i32 = arith.constant 0 : i32
    %c0_i32_0 = arith.constant 0 : i32
    %c0_i32_1 = arith.constant 0 : i32
    return %arg0, %c0_i32, %c0_i32_0 : i32, i32, i32
  }
  func.func @transform_1(%arg0: i32) -> (i32, i32) {
    %c0_i32 = arith.constant 0 : i32
    %c0_i32_0 = arith.constant 0 : i32
    %c0_i32_1 = arith.constant 0 : i32
    return %c0_i32, %c0_i32_0 : i32, i32
  }
  func.func @transform_2(%arg0: i32) -> (i32, i32) {
    %c0_i32 = arith.constant 0 : i32
    %c0_i32_0 = arith.constant 0 : i32
    %c0_i32_1 = arith.constant 0 : i32
    return %c0_i32, %c0_i32_0 : i32, i32
  }
  func.func @transform_3(%arg0: i32) -> (i32, i32, i32) {
    %c0_i32 = arith.constant 0 : i32
    %c0_i32_0 = arith.constant 0 : i32
    %c0_i32_1 = arith.constant 0 : i32
    %c0_i32_2 = arith.constant 0 : i32
    return %c0_i32, %c0_i32_0, %c0_i32_1 : i32, i32, i32
  }
  func.func @transform_4(%arg0: i32) -> (i32, i32, i32) {
    %c0_i32 = arith.constant 0 : i32
    %c0_i32_0 = arith.constant 0 : i32
    %c0_i32_1 = arith.constant 0 : i32
    return %arg0, %c0_i32, %c0_i32_0 : i32, i32, i32
  }
}

</mosaic_0001>

<llo_original>
// kernel: sample_forward.1
$region0: #{sample_forward.1}
  #allocation0 [shape = 'u32[]', space=smem, size = 0x4, offset = 0x4, fixed_abs, tag = 'smem constant byte address 0x4 - core index']
  #allocation1 [shape = 'u32[144,128]{1,0:T(1,128)}', space=vmem, size = 0x12000, scoped, tag = 'internal scratch']
  %s0 = inlined_call_operand.vmem [shape: f32[2,8,256], index: 0, kind: input, shape index: {}]
  %s1 = inlined_call_operand.vmem [shape: f32[8,72], index: 1, kind: input, shape index: {}]
  %s2 = inlined_call_operand.vmem [shape: f32[4,72], index: 2, kind: input, shape index: {}]
  %s3 = inlined_call_operand.vmem [shape: f32[9,1,256], index: 3, kind: input, shape index: {}]
  %s4 = inlined_call_operand.vmem [shape: f32[2,4,256], index: 4, kind: output, shape index: {}]
  %s5 = sld [smem:[#allocation0]]
  $region49: #{sample_forward.1} parent=0
    _
  %s7 = ssub.s32 1, %s5
  %s8 = scalar_select 0, %s7, %s5
  loop: start=0, step=1, limit=4
  $region2: #{sample_forward.1} parent=0 // loop_pre_header
    _
  $region3: #{sample_forward.1} parent=0 // loop_header
    %s10 = sphi 0, %s14
    %p11 = scmp.ge.s32.totalorder %s10, 4
    %s20 = sphi 0, %s22
    %s23 = sphi 0, %s20
    %s24 = sphi 0, %s23
    %s40 = sphi 0, %s24
    %s44 = sphi 0, %s44
    %s46 = sphi 0, %s44
    %s47 = sphi 0, %s46
    %s61 = sphi 0, %s47
    %s65 = sphi 0, %s65
    %s67 = sphi 0, %s65
    %s68 = sphi 0, %s67
    %s82 = sphi 0, %s68
    %s86 = sphi 0, %s86
    %s88 = sphi 0, %s86
    %s89 = sphi 0, %s88
    %s103 = sphi 0, %s89
    %s109 = sphi 0, %s111
    %s112 = sphi 0, %s109
    %s113 = sphi 0, %s112
    %s129 = sphi 0, %s113
  $region4: #{sample_forward.1} parent=0 // loop_header_branch
    %13 = sbr.rel (%p11) target = $region8
  $region5: #{sample_forward.1} parent=0 // loop_body
    %s15 = ssub.s32 %s10, 1
    %s16 = ssub.s32 %s10, 2
    %s17 = sadd.s32 %s10, 1
    %s18 = ssub.s32 %s10, %s17
    %p19 = scmp.eq.s32.totalorder %s18, 0
    %s21 = sadd.s32 %s20, 1
    %s22 = scalar_select %p19, %s20, %s21
    %p25 = pneg %p19
    %p26 = scmp.eq.s32.totalorder %s10, 1
    %p27 = por %p25, %p26
    %p28 = scmp.ne.s32.totalorder %s20, %s23
    %p29 = scmp.eq.s32.totalorder %s10, 0
    %p30 = por %p28, %p29
    %p31 = scmp.ne.s32.totalorder %s20, %s23
    %p32 = scmp.eq.s32.totalorder %s15, 1
    %p33 = por %p31, %p32
    %p34 = scmp.ne.s32.totalorder %s23, %s24
    %p35 = scmp.eq.s32.totalorder %s15, 0
    %p36 = por %p34, %p35
    %p37 = scmp.ne.s32.totalorder %s23, %s24
    %p38 = scmp.eq.s32.totalorder %s16, 1
    %p39 = por %p37, %p38
    %p41 = scmp.ne.s32.totalorder %s24, %s40
    %p42 = scmp.eq.s32.totalorder %s16, 0
    %p43 = por %p41, %p42
    %s45 = sadd.s32 %s44, 1
    %p48 = scmp.eq.s32.totalorder %s10, 1
    %p49 = scmp.ne.s32.totalorder %s44, %s46
    %p50 = scmp.eq.s32.totalorder %s10, 0
    %p51 = por %p49, %p50
    %p52 = scmp.ne.s32.totalorder %s44, %s46
    %p53 = scmp.eq.s32.totalorder %s15, 1
    %p54 = por %p52, %p53
    %p55 = scmp.ne.s32.totalorder %s46, %s47
    %p56 = scmp.eq.s32.totalorder %s15, 0
    %p57 = por %p55, %p56
    %p58 = scmp.ne.s32.totalorder %s46, %s47
    %p59 = scmp.eq.s32.totalorder %s16, 1
    %p60 = por %p58, %p59
    %p62 = scmp.ne.s32.totalorder %s47, %s61
    %p63 = scmp.eq.s32.totalorder %s16, 0
    %p64 = por %p62, %p63
    %s66 = sadd.s32 %s65, 1
    %p69 = scmp.eq.s32.totalorder %s10, 1
    %p70 = scmp.ne.s32.totalorder %s65, %s67
    %p71 = scmp.eq.s32.totalorder %s10, 0
    %p72 = por %p70, %p71
    %p73 = scmp.ne.s32.totalorder %s65, %s67
    %p74 = scmp.eq.s32.totalorder %s15, 1
    %p75 = por %p73, %p74
    %p76 = scmp.ne.s32.totalorder %s67, %s68
    %p77 = scmp.eq.s32.totalorder %s15, 0
    %p78 = por %p76, %p77
    %p79 = scmp.ne.s32.totalorder %s67, %s68
    %p80 = scmp.eq.s32.totalorder %s16, 1
    %p81 = por %p79, %p80
    %p83 = scmp.ne.s32.totalorder %s68, %s82
    %p84 = scmp.eq.s32.totalorder %s16, 0
    %p85 = por %p83, %p84
    %s87 = sadd.s32 %s86, 1
    %p90 = scmp.eq.s32.totalorder %s10, 1
    %p91 = scmp.ne.s32.totalorder %s86, %s88
    %p92 = scmp.eq.s32.totalorder %s10, 0
    %p93 = por %p91, %p92
    %p94 = scmp.ne.s32.totalorder %s86, %s88
    %p95 = scmp.eq.s32.totalorder %s15, 1
    %p96 = por %p94, %p95
    %p97 = scmp.ne.s32.totalorder %s88, %s89
    %p98 = scmp.eq.s32.totalorder %s15, 0
    %p99 = por %p97, %p98
    %p100 = scmp.ne.s32.totalorder %s88, %s89
    %p101 = scmp.eq.s32.totalorder %s16, 1
    %p102 = por %p100, %p101
    %p104 = scmp.ne.s32.totalorder %s89, %s103
    %p105 = scmp.eq.s32.totalorder %s16, 0
    %p106 = por %p104, %p105
    %s107 = ssub.s32 %s10, %s17
    %p108 = scmp.eq.s32.totalorder %s107, 0
    %s110 = sadd.s32 %s109, 1
    %s111 = scalar_select %p108, %s109, %s110
    %p114 = pneg %p108
    %p115 = scmp.eq.s32.totalorder %s10, 1
    %p116 = por %p114, %p115
    %p117 = scmp.ne.s32.totalorder %s109, %s112
    %p118 = scmp.eq.s32.totalorder %s10, 0
    %p119 = por %p117, %p118
    %p120 = scmp.ne.s32.totalorder %s109, %s112
    %p121 = scmp.eq.s32.totalorder %s15, 1
    %p122 = por %p120, %p121
    %p123 = scmp.ne.s32.totalorder %s112, %s113
    %p124 = scmp.eq.s32.totalorder %s15, 0
    %p125 = por %p123, %p124
    %p126 = scmp.ne.s32.totalorder %s112, %s113
    %p127 = scmp.eq.s32.totalorder %s16, 1
    %p128 = por %p126, %p127
    %p130 = scmp.ne.s32.totalorder %s113, %s129
    %p131 = scmp.eq.s32.totalorder %s16, 0
    %p132 = por %p130, %p131
    %p133 = scmp.le.s32.totalorder 1, %s10
    %p134 = scmp.lt.s32.totalorder %s10, 3
    %p135 = pnand %p133, %p134
    %p136 = pneg %p135
    // Predicated region
    $region9: #{sample_forward.1} parent=5 // pred_check
      _
    $region10: #{sample_forward.1} parent=5 // pred_check_branch
      %138 = sbr.rel (%p135) target = $region12
    $region11: #{sample_forward.1} parent=5 // pred_region
      %s139 = ssub.s32 %s10, 1
      // Predicated region
      $region13: #{sample_forward.1} parent=11 // pred_check
        %p140 = pneg %p57
      $region14: #{sample_forward.1} parent=11 // pred_check_branch
        %142 = sbr.rel (%p140) target = $region16
      $region15: #{sample_forward.1} parent=11 // pred_region
        _
      $region16: #{sample_forward.1} parent=11 // pred_fallthru
        _
      // Predicated region
      $region17: #{sample_forward.1} parent=11 // pred_check
        %p143 = pneg %p78
      $region18: #{sample_forward.1} parent=11 // pred_check_branch
        %145 = sbr.rel (%p143) target = $region20
      $region19: #{sample_forward.1} parent=11 // pred_region
        _
      $region20: #{sample_forward.1} parent=11 // pred_fallthru
        _
      // Predicated region
      $region21: #{sample_forward.1} parent=11 // pred_check
        %p146 = pneg %p99
      $region22: #{sample_forward.1} parent=11 // pred_check_branch
        %148 = sbr.rel (%p146) target = $region24
      $region23: #{sample_forward.1} parent=11 // pred_region
        _
      $region24: #{sample_forward.1} parent=11 // pred_fallthru
        _
    $region12: #{sample_forward.1} parent=5 // pred_fallthru
      _
    %p149 = scmp.lt.s32.totalorder %s10, 2
    // Predicated region
    $region25: #{sample_forward.1} parent=5 // pred_check
      %p150 = pneg %p149
    $region26: #{sample_forward.1} parent=5 // pred_check_branch
      %152 = sbr.rel (%p150) target = $region28
    $region27: #{sample_forward.1} parent=5 // pred_region
      // Predicated region
      $region29: #{sample_forward.1} parent=27 // pred_check
        %p153 = pneg %p30
      $region30: #{sample_forward.1} parent=27 // pred_check_branch
        %155 = sbr.rel (%p153) target = $region32
      $region31: #{sample_forward.1} parent=27 // pred_region
        %p156 = scmp.lt.s32.totalorder %s10, 1
        %s157 = scalar_select %p156, %s10, 1
        %s158 = smul.addr %s157, 2
        %s159 = smul.addr %s158, 8
        %s160 = scalar_lea.vmem %s0, %s159
      $region32: #{sample_forward.1} parent=27 // pred_fallthru
        _
    $region28: #{sample_forward.1} parent=5 // pred_fallthru
      _
    %p161 = scmp.le.s32.totalorder 1, %s10
    %p162 = scmp.lt.s32.totalorder %s10, 3
    %p163 = pnand %p161, %p162
    %p164 = pneg %p163
    // Predicated region
    $region33: #{sample_forward.1} parent=5 // pred_check
      _
    $region34: #{sample_forward.1} parent=5 // pred_check_branch
      %166 = sbr.rel (%p163) target = $region36
    $region35: #{sample_forward.1} parent=5 // pred_region
      %s167 = ssub.s32 %s10, 1
      %p168 = scmp.lt.s32.totalorder %s15, 1
      %s169 = scalar_select %p168, %s15, 1
      %s170 = smul.addr %s169, 2
      %s171 = smul.addr %s170, 8
      %s172 = scalar_lea.vmem %s0, %s171
      %p173 = pneg %p36
      %p174 = pneg %p33
      %p175 = pneg %p57
      %p176 = pneg %p54
      %p177 = pneg %p78
      %p178 = pneg %p75
      %p179 = pneg %p99
      %p180 = pneg %p96
      %p181 = pneg %p125
      %p182 = pneg %p122
      %p183 = scmp.lt.s32.totalorder %s15, 1
      %s184 = scalar_select %p183, %s15, 1
      %s185 = smul.addr %s184, 2
      %s186 = smul.addr %s185, 4
      %s187 = scalar_lea.vmem %s4, %s186
      %p188 = scmp.lt.s32.totalorder %s15, 1
      %s189 = scalar_select %p188, %s15, 1
      %s190 = smul.addr %s189, 2
      %s191 = smul.addr %s190, 8
      %s192 = scalar_lea.vmem %s0, %s191
      %p193 = scmp.lt.s32.totalorder %s15, 1
      %s194 = scalar_select %p193, %s15, 1
      %s195 = smul.addr %s194, 2
      %s196 = smul.addr %s195, 4
      %s197 = scalar_lea.vmem %s4, %s196
      %v198 = vld [vmem:[%s192] sm:$0xff]
      %v199 = vld [vmem:[%s192 + $0x8] sm:$0xff]
      %vm200 = vcmp.ge.f32.partialorder %v198, 0.0
      %vm201 = vcmp.ge.f32.partialorder %v199, 0.0
      %v202 = vmul.f32 %v198, 0.01
      %v203 = vmul.f32 %v199, 0.01
      %v204 = vsel %vm200, %v198, %v202
      %v205 = vsel %vm201, %v199, %v203
      %v206 = vld [vmem:[%s3] sm:$0x3]
      %s207 = scalar_lea.vmem %s3, 2
      %v208 = vld [vmem:[%s207] sm:$0x3]
      %s209 = scalar_lea.vmem %s3, 4
      %v210 = vld [vmem:[%s209] sm:$0x3]
      %s211 = scalar_lea.vmem %s3, 6
      %v212 = vld [vmem:[%s211] sm:$0x3]
      %s213 = scalar_lea.vmem %s3, 10
      %v214 = vld [vmem:[%s213] sm:$0x3]
      %s215 = scalar_lea.vmem %s3, 12
      %v216 = vld [vmem:[%s215] sm:$0x3]
      %s217 = scalar_lea.vmem %s3, 14
      %v218 = vld [vmem:[%s217] sm:$0x3]
      %s219 = scalar_lea.vmem %s3, 16
      %v220 = vld [vmem:[%s219] sm:$0x3]
      %v221 = vld [vmem:[%s1] sm:$0xff]
      %222 = vrot.lane.b32.xlu0 %v204, 17
      %v223 = vpop.permute.xlu0 %222
      %224 = vrot.lane.b32.xlu0 %v205, 17
      %v225 = vpop.permute.xlu0 %224
      %v226 = vlaneseq
      %v227 = vand.u32 %v226, 127
      %vm228 = vcmp.lt.s32.totalorder %v227, 17
      %v229 = vsel %vm228, %v223, %v225
      %v230 = vsel %vm228, %v225, %v223
      %v232 = vlaneseq
      %v233 = vshrl.u32 %v232, 7
      %v234 = vsub.s32 0, %v233
      %v235 = vrot.slane %v206, %v234
      %v236 = vlaneseq
      %v237 = vshrl.u32 %v236, 7
      %v238 = vsub.s32 1, %v237
      %v239 = vrot.slane %v206, %v238
      %v242 = vmul.f32 %v230, %v235
      %v243 = vmul.f32 %v229, %v239
      %244 = vrot.lane.b32.xlu0 %v204, 16
      %v245 = vpop.permute.xlu0 %244
      %246 = vrot.lane.b32.xlu0 %v205, 16
      %v247 = vpop.permute.xlu0 %246
      %vm248 = vcmp.lt.s32.totalorder %v227, 16
      %v249 = vsel %vm248, %v245, %v247
      %v250 = vsel %vm248, %v247, %v245
      %v252 = vlaneseq
      %v253 = vshrl.u32 %v252, 7
      %v254 = vsub.s32 0, %v253
      %v255 = vrot.slane %v208, %v254
      %v256 = vlaneseq
      %v257 = vshrl.u32 %v256, 7
      %v258 = vsub.s32 1, %v257
      %v259 = vrot.slane %v208, %v258
      %v262 = vmul.f32 %v250, %v255
      %v263 = vmul.f32 %v249, %v259
      %264 = vrot.lane.b32.xlu0 %v204, 15
      %v265 = vpop.permute.xlu0 %264
      %266 = vrot.lane.b32.xlu0 %v205, 15
      %v267 = vpop.permute.xlu0 %266
      %vm268 = vcmp.lt.s32.totalorder %v227, 15
      %v269 = vsel %vm268, %v265, %v267
      %v270 = vsel %vm268, %v267, %v265
      %v272 = vlaneseq
      %v273 = vshrl.u32 %v272, 7
      %v274 = vsub.s32 0, %v273
      %v275 = vrot.slane %v210, %v274
      %v276 = vlaneseq
      %v277 = vshrl.u32 %v276, 7
      %v278 = vsub.s32 1, %v277
      %v279 = vrot.slane %v210, %v278
      %v282 = vmul.f32 %v270, %v275
      %v283 = vmul.f32 %v269, %v279
      %284 = vrot.lane.b32.xlu0 %v204, 1
      %v285 = vpop.permute.xlu0 %284
      %286 = vrot.lane.b32.xlu0 %v205, 1
      %v287 = vpop.permute.xlu0 %286
      %vm288 = vcmp.lt.s32.totalorder %v227, 1
      %v289 = vsel %vm288, %v285, %v287
      %v290 = vsel %vm288, %v287, %v285
      %v292 = vlaneseq
      %v293 = vshrl.u32 %v292, 7
      %v294 = vsub.s32 0, %v293
      %v295 = vrot.slane %v212, %v294
      %v296 = vlaneseq
      %v297 = vshrl.u32 %v296, 7
      %v298 = vsub.s32 1, %v297
      %v299 = vrot.slane %v212, %v298
      %v302 = vmul.f32 %v290, %v295
      %v303 = vmul.f32 %v289, %v299
      %304 = vrot.lane.b32.xlu0 %v204, 127
      %v305 = vpop.permute.xlu0 %304
      %306 = vrot.lane.b32.xlu0 %v205, 127
      %v307 = vpop.permute.xlu0 %306
      %vm308 = vcmp.lt.s32.totalorder %v227, 127
      %v309 = vsel %vm308, %v305, %v307
      %v310 = vsel %vm308, %v307, %v305
      %v312 = vlaneseq
      %v313 = vshrl.u32 %v312, 7
      %v314 = vsub.s32 0, %v313
      %v315 = vrot.slane %v214, %v314
      %v316 = vlaneseq
      %v317 = vshrl.u32 %v316, 7
      %v318 = vsub.s32 1, %v317
      %v319 = vrot.slane %v214, %v318
      %v322 = vmul.f32 %v309, %v315
      %v323 = vmul.f32 %v310, %v319
      %324 = vrot.lane.b32.xlu0 %v204, 113
      %v325 = vpop.permute.xlu0 %324
      %326 = vrot.lane.b32.xlu0 %v205, 113
      %v327 = vpop.permute.xlu0 %326
      %vm328 = vcmp.lt.s32.totalorder %v227, 113
      %v329 = vsel %vm328, %v325, %v327
      %v330 = vsel %vm328, %v327, %v325
      %v332 = vlaneseq
      %v333 = vshrl.u32 %v332, 7
      %v334 = vsub.s32 0, %v333
      %v335 = vrot.slane %v216, %v334
      %v336 = vlaneseq
      %v337 = vshrl.u32 %v336, 7
      %v338 = vsub.s32 1, %v337
      %v339 = vrot.slane %v216, %v338
      %v342 = vmul.f32 %v329, %v335
      %v343 = vmul.f32 %v330, %v339
      %344 = vrot.lane.b32.xlu0 %v204, 112
      %v345 = vpop.permute.xlu0 %344
      %346 = vrot.lane.b32.xlu0 %v205, 112
      %v347 = vpop.permute.xlu0 %346
      %vm348 = vcmp.lt.s32.totalorder %v227, 112
      %v349 = vsel %vm348, %v345, %v347
      %v350 = vsel %vm348, %v347, %v345
      %v352 = vlaneseq
      %v353 = vshrl.u32 %v352, 7
      %v354 = vsub.s32 0, %v353
      %v355 = vrot.slane %v218, %v354
      %v356 = vlaneseq
      %v357 = vshrl.u32 %v356, 7
      %v358 = vsub.s32 1, %v357
      %v359 = vrot.slane %v218, %v358
      %v362 = vmul.f32 %v349, %v355
      %v363 = vmul.f32 %v350, %v359
      %364 = vrot.lane.b32.xlu0 %v204, 111
      %v365 = vpop.permute.xlu0 %364
      %366 = vrot.lane.b32.xlu0 %v205, 111
      %v367 = vpop.permute.xlu0 %366
      %vm368 = vcmp.lt.s32.totalorder %v227, 111
      %v369 = vsel %vm368, %v365, %v367
      %v370 = vsel %vm368, %v367, %v365
      %v372 = vlaneseq
      %v373 = vshrl.u32 %v372, 7
      %v374 = vsub.s32 0, %v373
      %v375 = vrot.slane %v220, %v374
      %v376 = vlaneseq
      %v377 = vshrl.u32 %v376, 7
      %v378 = vsub.s32 1, %v377
      %v379 = vrot.slane %v220, %v378
      %v382 = vmul.f32 %v369, %v375
      %v383 = vmul.f32 %v370, %v379
      %vm384 = vcmask 588800
      %v386 = vsel %vm384, %v221, 0
      %388 = vmatprep.subr.mxu0 0.0
      %389 = vmatpush1.msra.mxu0 0.0
      %390 = vmatprep.subr.mxu0 0.0
      %391 = vmatpush1.msra.mxu0 0.0
      %392 = vmatprep.subr.mxu0 0.0
      %393 = vmatpush1.msra.mxu0 0.0
      %394 = vmatprep.subr.mxu0 0.0
      %395 = vmatpush1.msra.mxu0 0.0
      %396 = vmatprep.subr.mxu0 0.0
      %397 = vmatpush1.msra.mxu0 0.0
      %398 = vmatprep.subr.mxu0 0.0
      %399 = vmatpush1.msra.mxu0 0.0
      %400 = vmatprep.subr.mxu0 0.0
      %401 = vmatpush1.msra.mxu0 0.0
      %402 = vmatprep.subr.mxu0 %v383
      %403 = vmatpush1.msra.mxu0 %v382
      %404 = vmatprep.subr.mxu0 %v363
      %405 = vmatpush1.msra.mxu0 %v362
      %406 = vmatprep.subr.mxu0 %v343
      %407 = vmatpush1.msra.mxu0 %v342
      %408 = vmatprep.subr.mxu0 %v323
      %409 = vmatpush1.msra.mxu0 %v322
      %410 = vmatprep.subr.mxu0 %v205
      %411 = vmatpush1.msra.mxu0 %v204
      %412 = vmatprep.subr.mxu0 %v303
      %413 = vmatpush1.msra.mxu0 %v302
      %414 = vmatprep.subr.mxu0 %v283
      %415 = vmatpush1.msra.mxu0 %v282
      %416 = vmatprep.subr.mxu0 %v263
      %417 = vmatpush1.msra.mxu0 %v262
      %418 = vmatprep.subr.mxu0 %v243
      %419 = vmatpush1.msra.mxu0 %v242
      %420 = vmatprep.subr.mxu0 0.0
      %421 = vmatpush2.msra.mxu0 0.0
      %422 = vmatprep.subr.mxu0 0.0
      %423 = vmatpush2.msra.mxu0 0.0
      %424 = vmatprep.subr.mxu0 0.0
      %425 = vmatpush2.msra.mxu0 0.0
      %426 = vmatprep.subr.mxu0 0.0
      %427 = vmatpush2.msra.mxu0 0.0
      %428 = vmatprep.subr.mxu0 0.0
      %429 = vmatpush2.msra.mxu0 0.0
      %430 = vmatprep.subr.mxu0 0.0
      %431 = vmatpush2.msra.mxu0 0.0
      %432 = vmatprep.subr.mxu0 0.0
      %433 = vmatpush2.msra.mxu0 0.0
      %434 = vmatprep.subr.mxu0 0.0
      %435 = vmatpush2.msra.mxu0 0.0
      %436 = vmatprep.subr.mxu0 0.0
      %437 = vmatpush2.msra.mxu0 0.0
      %438 = vmatprep.subr.mxu0 0.0
      %439 = vmatpush2.msra.mxu0 0.0
      %440 = vmatprep.subr.mxu0 0.0
      %441 = vmatpush2.msra.mxu0 0.0
      %442 = vmatprep.subr.mxu0 0.0
      %443 = vmatpush2.msra.mxu0 0.0
      %444 = vmatprep.subr.mxu0 0.0
      %445 = vmatpush2.msra.mxu0 0.0
      %446 = vmatprep.subr.mxu0 0.0
      %447 = vmatpush2.msra.mxu0 0.0
      %448 = vmatprep.subr.mxu0 0.0
      %449 = vmatpush2.msra.mxu0 0.0
      %450 = vmatprep.subr.mxu0 0.0
      %451 = vmatpush2.msra.mxu0 0.0
      %452 = vmatprep.mubr.f32.mxu0 0.0
      %453 = vmatmul.mubr.f32.gmra.mxu0 %v386
      %v454 = vpop.f32.mrf.mxu0
      %v455 = vadd.f32 0.0, %v454
      %v456 = vpop.f32.mrf.mxu0
      %v457 = vadd.f32 0.0, %v456
      %458 = vdwg.mxu0
      %v459 = vadd.f32 %v455, %v457
      %460 = vadd.xlane.f32.xlu0 %v459
      %v461 = vpop.xlane.xlu0 %460
      %v462 = vmul.f32 %v461, 0.00390625
      %v463 = vmul.f32 %v455, %v455
      %v464 = vmul.f32 %v457, %v457
      %v465 = vadd.f32 %v463, %v464
      %466 = vadd.xlane.f32.xlu0 %v465
      %v467 = vpop.xlane.xlu0 %466
      %v468 = vmul.f32 %v467, 0.00390625
      %v469 = vmul.f32 %v462, %v462
      %v470 = vsub.f32 %v468, %v469
      %v471 = vsub.f32 %v455, %v462
      %v472 = vsub.f32 %v457, %v462
      %v473 = vadd.f32 %v470, 1e-05
      %v474 = vrsqrt.pop %v473
      %v475 = vmul.f32 %v471, %v474
      %v476 = vmul.f32 %v472, %v474
      %v477 = vld [vmem:[%s2] sm:$0xf]
      %478 = vrot.lane.b32.xlu0 %v475, 17
      %v479 = vpop.permute.xlu0 %478
      %480 = vrot.lane.b32.xlu0 %v476, 17
      %v481 = vpop.permute.xlu0 %480
      %v482 = vsel %vm228, %v479, %v481
      %v483 = vsel %vm228, %v481, %v479
      %v484 = vmul.f32 %v483, %v235
      %v485 = vmul.f32 %v482, %v239
      %486 = vrot.lane.b32.xlu0 %v475, 16
      %v487 = vpop.permute.xlu0 %486
      %488 = vrot.lane.b32.xlu0 %v476, 16
      %v489 = vpop.permute.xlu0 %488
      %v490 = vsel %vm248, %v487, %v489
      %v491 = vsel %vm248, %v489, %v487
      %v492 = vmul.f32 %v491, %v255
      %v493 = vmul.f32 %v490, %v259
      %494 = vrot.lane.b32.xlu0 %v475, 15
      %v495 = vpop.permute.xlu0 %494
      %496 = vrot.lane.b32.xlu0 %v476, 15
      %v497 = vpop.permute.xlu0 %496
      %v498 = vsel %vm268, %v495, %v497
      %v499 = vsel %vm268, %v497, %v495
      %v500 = vmul.f32 %v499, %v275
      %v501 = vmul.f32 %v498, %v279
      %502 = vrot.lane.b32.xlu0 %v475, 1
      %v503 = vpop.permute.xlu0 %502
      %504 = vrot.lane.b32.xlu0 %v476, 1
      %v505 = vpop.permute.xlu0 %504
      %v506 = vsel %vm288, %v503, %v505
      %v507 = vsel %vm288, %v505, %v503
      %v508 = vmul.f32 %v507, %v295
      %v509 = vmul.f32 %v506, %v299
      %510 = vrot.lane.b32.xlu0 %v475, 127
      %v511 = vpop.permute.xlu0 %510
      %512 = vrot.lane.b32.xlu0 %v476, 127
      %v513 = vpop.permute.xlu0 %512
      %v514 = vsel %vm308, %v511, %v513
      %v515 = vsel %vm308, %v513, %v511
      %v516 = vmul.f32 %v514, %v315
      %v517 = vmul.f32 %v515, %v319
      %518 = vrot.lane.b32.xlu0 %v475, 113
      %v519 = vpop.permute.xlu0 %518
      %520 = vrot.lane.b32.xlu0 %v476, 113
      %v521 = vpop.permute.xlu0 %520
      %v522 = vsel %vm328, %v519, %v521
      %v523 = vsel %vm328, %v521, %v519
      %v524 = vmul.f32 %v522, %v335
      %v525 = vmul.f32 %v523, %v339
      %526 = vrot.lane.b32.xlu0 %v475, 112
      %v527 = vpop.permute.xlu0 %526
      %528 = vrot.lane.b32.xlu0 %v476, 112
      %v529 = vpop.permute.xlu0 %528
      %v530 = vsel %vm348, %v527, %v529
      %v531 = vsel %vm348, %v529, %v527
      %v532 = vmul.f32 %v530, %v355
      %v533 = vmul.f32 %v531, %v359
      %534 = vrot.lane.b32.xlu0 %v475, 111
      %v535 = vpop.permute.xlu0 %534
      %536 = vrot.lane.b32.xlu0 %v476, 111
      %v537 = vpop.permute.xlu0 %536
      %v538 = vsel %vm368, %v535, %v537
      %v539 = vsel %vm368, %v537, %v535
      %v540 = vmul.f32 %v538, %v375
      %v541 = vmul.f32 %v539, %v379
      %v543 = vsel %vm384, %v477, 0
      %545 = vmatprep.subr.mxu0 0.0
      %546 = vmatpush1.msra.mxu0 0.0
      %547 = vmatprep.subr.mxu0 0.0
      %548 = vmatpush1.msra.mxu0 0.0
      %549 = vmatprep.subr.mxu0 0.0
      %550 = vmatpush1.msra.mxu0 0.0
      %551 = vmatprep.subr.mxu0 0.0
      %552 = vmatpush1.msra.mxu0 0.0
      %553 = vmatprep.subr.mxu0 0.0
      %554 = vmatpush1.msra.mxu0 0.0
      %555 = vmatprep.subr.mxu0 0.0
      %556 = vmatpush1.msra.mxu0 0.0
      %557 = vmatprep.subr.mxu0 0.0
      %558 = vmatpush1.msra.mxu0 0.0
      %559 = vmatprep.subr.mxu0 %v541
      %560 = vmatpush1.msra.mxu0 %v540
      %561 = vmatprep.subr.mxu0 %v533
      %562 = vmatpush1.msra.mxu0 %v532
      %563 = vmatprep.subr.mxu0 %v525
      %564 = vmatpush1.msra.mxu0 %v524
      %565 = vmatprep.subr.mxu0 %v517
      %566 = vmatpush1.msra.mxu0 %v516
      %567 = vmatprep.subr.mxu0 %v476
      %568 = vmatpush1.msra.mxu0 %v475
      %569 = vmatprep.subr.mxu0 %v509
      %570 = vmatpush1.msra.mxu0 %v508
      %571 = vmatprep.subr.mxu0 %v501
      %572 = vmatpush1.msra.mxu0 %v500
      %573 = vmatprep.subr.mxu0 %v493
      %574 = vmatpush1.msra.mxu0 %v492
      %575 = vmatprep.subr.mxu0 %v485
      %576 = vmatpush1.msra.mxu0 %v484
      %577 = vmatprep.subr.mxu0 0.0
      %578 = vmatpush2.msra.mxu0 0.0
      %579 = vmatprep.subr.mxu0 0.0
      %580 = vmatpush2.msra.mxu0 0.0
      %581 = vmatprep.subr.mxu0 0.0
      %582 = vmatpush2.msra.mxu0 0.0
      %583 = vmatprep.subr.mxu0 0.0
      %584 = vmatpush2.msra.mxu0 0.0
      %585 = vmatprep.subr.mxu0 0.0
      %586 = vmatpush2.msra.mxu0 0.0
      %587 = vmatprep.subr.mxu0 0.0
      %588 = vmatpush2.msra.mxu0 0.0
      %589 = vmatprep.subr.mxu0 0.0
      %590 = vmatpush2.msra.mxu0 0.0
      %591 = vmatprep.subr.mxu0 0.0
      %592 = vmatpush2.msra.mxu0 0.0
      %593 = vmatprep.subr.mxu0 0.0
      %594 = vmatpush2.msra.mxu0 0.0
      %595 = vmatprep.subr.mxu0 0.0
      %596 = vmatpush2.msra.mxu0 0.0
      %597 = vmatprep.subr.mxu0 0.0
      %598 = vmatpush2.msra.mxu0 0.0
      %599 = vmatprep.subr.mxu0 0.0
      %600 = vmatpush2.msra.mxu0 0.0
      %601 = vmatprep.subr.mxu0 0.0
      %602 = vmatpush2.msra.mxu0 0.0
      %603 = vmatprep.subr.mxu0 0.0
      %604 = vmatpush2.msra.mxu0 0.0
      %605 = vmatprep.subr.mxu0 0.0
      %606 = vmatpush2.msra.mxu0 0.0
      %607 = vmatprep.subr.mxu0 0.0
      %608 = vmatpush2.msra.mxu0 0.0
      %609 = vmatprep.mubr.f32.mxu0 0.0
      %610 = vmatmul.mubr.f32.gmra.mxu0 %v543
      %v611 = vpop.f32.mrf.mxu0
      %v612 = vadd.f32 0.0, %v611
      %v613 = vpop.f32.mrf.mxu0
      %v614 = vadd.f32 0.0, %v613
      %615 = vdwg.mxu0
      %vm616 = vcmask 1043456
      %v617 = vsel %vm616, %v612, 0.0
      %v618 = vsel %vm616, %v614, 0.0
      %v619 = vadd.f32 %v617, %v618
      %620 = vadd.xlane.f32.xlu0 %v619
      %v621 = vpop.xlane.xlu0 %620
      %v622 = vmul.f32 %v621, 0.00390625
      %v623 = vmul.f32 %v612, %v612
      %v624 = vmul.f32 %v614, %v614
      %v625 = vsel %vm616, %v623, 0.0
      %v626 = vsel %vm616, %v624, 0.0
      %v627 = vadd.f32 %v625, %v626
      %628 = vadd.xlane.f32.xlu0 %v627
      %v629 = vpop.xlane.xlu0 %628
      %v630 = vmul.f32 %v629, 0.00390625
      %v631 = vmul.f32 %v622, %v622
      %v632 = vsub.f32 %v630, %v631
      %v633 = vsub.f32 %v612, %v622
      %v634 = vsub.f32 %v614, %v622
      %v635 = vadd.f32 %v632, 1e-05
      %v636 = vrsqrt.pop %v635
      %v637 = vmul.f32 %v633, %v636
      %v638 = vmul.f32 %v634, %v636
      %v641 = vcombine.low %v637, %v638
      %643 = vst [vmem:[%s197] sm:$0xff] %v641
      %p644 = scmp.lt.s32.totalorder %s15, 1
      %s645 = scalar_select %p644, %s15, 1
      %s646 = smul.addr %s645, 2
      %s647 = smul.addr %s646, 4
      %s648 = scalar_lea.vmem %s4, %s647
      // Predicated region
      $region37: #{sample_forward.1} parent=35 // pred_check
        %p649 = pneg %p122
      $region38: #{sample_forward.1} parent=35 // pred_check_branch
        %651 = sbr.rel (%p649) target = $region40
      $region39: #{sample_forward.1} parent=35 // pred_region
        _
      $region40: #{sample_forward.1} parent=35 // pred_fallthru
        _
    $region36: #{sample_forward.1} parent=5 // pred_fallthru
      _
    %p652 = scmp.le.s32.totalorder 2, %s10
    // Predicated region
    $region41: #{sample_forward.1} parent=5 // pred_check
      %p653 = pneg %p652
    $region42: #{sample_forward.1} parent=5 // pred_check_branch
      %655 = sbr.rel (%p653) target = $region44
    $region43: #{sample_forward.1} parent=5 // pred_region
      %s656 = ssub.s32 %s10, 2
      // Predicated region
      $region45: #{sample_forward.1} parent=43 // pred_check
        %p657 = pneg %p128
      $region46: #{sample_forward.1} parent=43 // pred_check_branch
        %659 = sbr.rel (%p657) target = $region48
      $region47: #{sample_forward.1} parent=43 // pred_region
        %p660 = scmp.lt.s32.totalorder %s16, 1
        %s661 = scalar_select %p660, %s16, 1
        %s662 = smul.addr %s661, 2
        %s663 = smul.addr %s662, 4
        %s664 = scalar_lea.vmem %s4, %s663
      $region48: #{sample_forward.1} parent=43 // pred_fallthru
        _
    $region44: #{sample_forward.1} parent=5 // pred_fallthru
      _
  $region6: #{sample_forward.1} parent=0 // loop_footer
    %s14 = sadd.s32 1, %s10
  $region7: #{sample_forward.1} parent=0 // loop_footer_branch
    %9 = sbr.rel target = $region3
  $region8: #{sample_forward.1} parent=0 // loop_exit
    _

</llo_original>
